<compile_context>
chip_gen: v7x
topology: tpu7x:2x2x1
jax: 0.10.0
libtpu: 0.0.40
codegen_flags: <defaults>
</compile_context>

<pallas_src>
import jax
import jax.numpy as jnp
from jax.experimental import pallas as pl
from jax.experimental.pallas import tpu as pltpu


def _cdiv(a, b):
    return -(-a // b)


def _round_up(a, b):
    return _cdiv(a, b) * b


def _downsample_kernel(x_ref, w_ref, b_ref, o_ref):
    # x_ref : (1, K, TM)   space-to-depth'd activations, native dtype (e.g. bf16)
    # w_ref : (Cout, K)    1x1-conv weight, pre-cast to the activation dtype
    # b_ref : (Cout, 1)    bias, fp32 (added to the fp32 MXU accumulator)
    # o_ref : (1, Cout, TM) output, spatial pixels lane-dense
    acc = jnp.dot(w_ref[...], x_ref[0], preferred_element_type=jnp.float32)
    o_ref[0] = (acc + b_ref[...]).astype(o_ref.dtype)


def _vmem_capacity_bytes():
    try:
        return int(pltpu.get_tpu_info().vmem_capacity_bytes)
    except Exception:
        return 64 * 1024 * 1024  # v7x per-TC VMEM: the tightest budget across gens


def _choose_tile_m(M, K, Cout, itemsize, n_batch, vmem_cap):
    """Pick the output-pixel tile (lane dim): multiple of 128, VMEM-budgeted."""
    if M <= 128:
        return M  # block == full array extent (allowed by the (8,128) rule)
    # Resident params get 2 buffers each even with a constant (0,0) index_map.
    resident = 2 * (Cout * K * itemsize + Cout * 4)
    budget = max(int(0.45 * vmem_cap) - resident - (4 << 20), 4 << 20)
    per_pixel = 2 * (K + Cout) * itemsize          # double-buffered in + out blocks
    tm = (budget // per_pixel) // 128 * 128
    tm = int(max(128, min(tm, 2048, _round_up(M, 128))))
    if n_batch == 1:
        # v7x megacore: guarantee >= 2 grid steps so both TensorCores get work.
        tm = min(tm, max(128, _round_up(_cdiv(M, 2), 128)))
    return tm


def downsample_forward(x_nchw, weight, bias):
    """PyTorch Downsample: Rearrange('b c (h 2) (w 2) -> b (c 2 2) h w') + Conv2d(4*Cin, Cout, 1)."""
    N, Cin, H, W = x_nchw.shape
    assert H % 2 == 0 and W % 2 == 0, "spatial dims must be even"
    Ho, Wo = H // 2, W // 2
    M, K = Ho * Wo, 4 * Cin
    Cout = weight.shape[0]
    dt = x_nchw.dtype
    itemsize = jnp.dtype(dt).itemsize

    # Space-to-depth in torch channel order (c, p1, p2), flattened over output
    # pixels -> (N, K, M).  One fused XLA transpose (layout plumbing, see TODO above).
    xr = x_nchw.reshape(N, Cin, Ho, 2, Wo, 2)
    xr = jnp.transpose(xr, (0, 1, 3, 5, 2, 4)).reshape(N, K, M)

    # Loop-invariant params prepared once outside the kernel (no per-step casts).
    w2 = weight.reshape(Cout, K).astype(dt)           # matmul weight, compute dtype
    b2 = bias.reshape(Cout, 1).astype(jnp.float32)    # fp32 bias for the fp32 acc

    vmem_cap = _vmem_capacity_bytes()
    tm = _choose_tile_m(M, K, Cout, itemsize, N, vmem_cap)
    grid_m = _cdiv(M, tm)

    # Explicit VMEM budget: double-buffered activation/output blocks + (double-
    # buffered) resident params + slack for compiler-internal scratch, capped per
    # generation (never above 60% of physical VMEM).
    need = 2 * (K + Cout) * tm * itemsize + 2 * (Cout * K * itemsize + Cout * 4)
    vmem_limit = int(min(max(need * 3 // 2 + (4 << 20), 16 << 20), int(0.6 * vmem_cap)))

    out = pl.pallas_call(
        _downsample_kernel,
        out_shape=jax.ShapeDtypeStruct((N, Cout, M), dt),
        grid_spec=pltpu.PrefetchScalarGridSpec(
            num_scalar_prefetch=0,
            grid=(N, grid_m),
            in_specs=[
                pl.BlockSpec((1, K, tm), lambda n, j: (n, 0, j)),   # activations
                pl.BlockSpec((Cout, K), lambda n, j: (0, 0)),       # weight (resident)
                pl.BlockSpec((Cout, 1), lambda n, j: (0, 0)),       # bias   (resident)
            ],
            out_specs=pl.BlockSpec((1, Cout, tm), lambda n, j: (n, 0, j)),
        ),
        compiler_params=pltpu.CompilerParams(
            dimension_semantics=("parallel", "parallel"),
            vmem_limit_bytes=vmem_limit,
        ),
    )(xr, w2, b2)

    # Output is already NCHW-flattened; this reshape is metadata-only.
    return out.reshape(N, Cout, Ho, Wo)


def _reference(x, weight, bias):
    # Independent reference: the rearrange + 1x1 conv equals a stride-2 2x2 conv
    # with the weight reshaped to (Cout, Cin, 2, 2) in (c, p1, p2) order.
    Cout = weight.shape[0]
    Cin = weight.shape[1] // 4
    w22 = weight.reshape(Cout, Cin, 2, 2)
    out = jax.lax.conv_general_dilated(
        x, w22,
        window_strides=(2, 2), padding="VALID",
        dimension_numbers=("NCHW", "OIHW", "NCHW"),
        precision=jax.lax.Precision.HIGHEST,
    )
    return out + bias.reshape(1, -1, 1, 1)


if __name__ == "__main__":
    key = jax.random.PRNGKey(0)

    def run_case(idx, N, Cin, Cout, H, W, dtype, tol):
        k1, k2, k3 = jax.random.split(jax.random.fold_in(key, idx), 3)
        x = jax.random.normal(k1, (N, Cin, H, W), jnp.float32).astype(dtype)
        fan_in = Cin * 4
        bound = 1.0 / (fan_in ** 0.5)
        weight = jax.random.uniform(
            k2, (Cout, Cin * 4, 1, 1), jnp.float32, -bound, bound).astype(dtype)
        bias = jax.random.uniform(k3, (Cout,), jnp.float32, -bound, bound)

        out = jax.block_until_ready(jax.jit(downsample_forward)(x, weight, bias))
        ref = _reference(x.astype(jnp.float32), weight.astype(jnp.float32), bias)

        assert out.shape == (N, Cout, H // 2, W // 2), out.shape
        err = float(jnp.max(jnp.abs(out.astype(jnp.float32) - ref)))
        assert err < tol, f"case {idx}: max |err| = {err}"

    # Canonical toy shape (fp32), same math path as production fp32.
    run_case(0, 2, 4, 8, 16, 16, jnp.float32, 1e-2)
    # bf16 end-to-end: native-dtype operands into the MXU, fp32 accumulation.
    run_case(1, 2, 4, 8, 16, 16, jnp.bfloat16, 5e-2)
    # N == 1: exercises the >=2-grid-step (megacore) split of the M axis.
    run_case(2, 1, 8, 16, 32, 32, jnp.float32, 1e-2)

    print("KERNEL_OK")
</pallas_src>

<mosaic_0001>
module attributes {stable_mosaic.version = 11 : i64} {
  func.func @_downsample_kernel(%arg0: i32, %arg1: i32, %arg2: memref<1x16x64xf32, #tpu.memory_space<vmem>>, %arg3: memref<8x16xf32, #tpu.memory_space<vmem>>, %arg4: memref<8x1xf32, #tpu.memory_space<vmem>>, %arg5: memref<1x8x64xf32, #tpu.memory_space<vmem>>) attributes {dimension_semantics = [#tpu.dimension_semantics<parallel>, #tpu.dimension_semantics<parallel>], iteration_bounds = array<i64: 2, 1>, scalar_prefetch = 0 : i64, scratch_operands = 0 : i64, tpu.core_type = #tpu.core_type<tc>, window_params = [{transform_indices = @transform_0, window_bounds = array<i64: 1, 16, 64>}, {pipeline_mode = #tpu.pipeline_mode<synchronous>, transform_indices = @transform_1, window_bounds = array<i64: 8, 16>}, {pipeline_mode = #tpu.pipeline_mode<synchronous>, transform_indices = @transform_2, window_bounds = array<i64: 8, 1>}, {transform_indices = @transform_3, window_bounds = array<i64: 1, 8, 64>}]} {
    %c0 = arith.constant 0 : index
    %c0_0 = arith.constant 0 : index
    %0 = vector.load %arg3[%c0, %c0_0] : memref<8x16xf32, #tpu.memory_space<vmem>>, vector<8x16xf32>
    %c0_1 = arith.constant 0 : index
    %c0_2 = arith.constant 0 : index
    %c0_3 = arith.constant 0 : index
    %1 = vector.load %arg2[%c0_1, %c0_2, %c0_3] : memref<1x16x64xf32, #tpu.memory_space<vmem>>, vector<1x16x64xf32>
    %2 = vector.shape_cast %1 : vector<1x16x64xf32> to vector<16x64xf32>
    %cst = arith.constant dense<0.000000e+00> : vector<8x64xf32>
    %3 = tpu.matmul %0, %2, %cst {dimension_numbers = #tpu.dot_dimension_numbers<[1], [0], [0], [1], [0, 0, 1, 1], [], []>} : vector<8x16xf32>, vector<16x64xf32>, vector<8x64xf32> -> vector<8x64xf32>
    %c0_4 = arith.constant 0 : index
    %c0_5 = arith.constant 0 : index
    %4 = vector.load %arg4[%c0_4, %c0_5] : memref<8x1xf32, #tpu.memory_space<vmem>>, vector<8x1xf32>
    %5 = vector.broadcast %4 : vector<8x1xf32> to vector<8x64xf32>
    %6 = arith.addf %3, %5 : vector<8x64xf32>
    %c0_6 = arith.constant 0 : index
    %c0_7 = arith.constant 0 : index
    %c0_8 = arith.constant 0 : index
    %7 = vector.load %arg5[%c0_6, %c0_7, %c0_8] : memref<1x8x64xf32, #tpu.memory_space<vmem>>, vector<1x8x64xf32>
    %8 = vector.shape_cast %7 : vector<1x8x64xf32> to vector<8x64xf32>
    %9 = vector.shape_cast %6 : vector<8x64xf32> to vector<1x8x64xf32>
    tpu.vector_store %arg5[%c0_6, %c0_7, %c0_8], %9 {strides = array<i32>} : memref<1x8x64xf32, #tpu.memory_space<vmem>>, vector<1x8x64xf32>,
    return
  }
  func.func @transform_0(%arg0: i32, %arg1: i32) -> (i32, i32, i32) {
    %c0_i32 = arith.constant 0 : i32
    %c0_i32_0 = arith.constant 0 : i32
    return %arg0, %c0_i32, %arg1 : i32, i32, i32
  }
  func.func @transform_1(%arg0: i32, %arg1: i32) -> (i32, i32) {
    %c0_i32 = arith.constant 0 : i32
    %c0_i32_0 = arith.constant 0 : i32
    %c0_i32_1 = arith.constant 0 : i32
    return %c0_i32, %c0_i32_0 : i32, i32
  }
  func.func @transform_2(%arg0: i32, %arg1: i32) -> (i32, i32) {
    %c0_i32 = arith.constant 0 : i32
    %c0_i32_0 = arith.constant 0 : i32
    %c0_i32_1 = arith.constant 0 : i32
    return %c0_i32, %c0_i32_0 : i32, i32
  }
  func.func @transform_3(%arg0: i32, %arg1: i32) -> (i32, i32, i32) {
    %c0_i32 = arith.constant 0 : i32
    %c0_i32_0 = arith.constant 0 : i32
    return %arg0, %c0_i32, %arg1 : i32, i32, i32
  }
}

</mosaic_0001>

<llo_original>
// kernel: downsample_forward.1
$region0: #{downsample_forward.1}
  #allocation0 [shape = 'u32[]', space=smem, size = 0x4, offset = 0x4, fixed_abs, tag = 'smem constant byte address 0x4 - core index']
  #allocation1 [shape = 'u32[144,128]{1,0:T(1,128)}', space=vmem, size = 0x12000, scoped, tag = 'internal scratch']
  %s0 = inlined_call_operand.vmem [shape: f32[2,16,64], index: 0, kind: input, shape index: {}]
  %s1 = inlined_call_operand.vmem [shape: f32[8,16], index: 1, kind: input, shape index: {}]
  %s2 = inlined_call_operand.vmem [shape: f32[8,1], index: 2, kind: input, shape index: {}]
  %s3 = inlined_call_operand.vmem [shape: f32[2,8,64], index: 3, kind: output, shape index: {}]
  %s4 = sld [smem:[#allocation0]]
  $region45: #{downsample_forward.1} parent=0
    _
  %s6 = ssub.s32 1, %s4
  %s7 = scalar_select 0, %s6, %s4
  loop: start=0, step=1, limit=4
  $region2: #{downsample_forward.1} parent=0 // loop_pre_header
    _
  $region3: #{downsample_forward.1} parent=0 // loop_header
    %s9 = sphi 0, %s13
    %p10 = scmp.ge.s32.totalorder %s9, 4
    %s16 = sphi 0, %s28
    %s17 = sphi 0, %s24
    %s18 = sphi 0, %s16
    %s19 = sphi 0, %s17
    %s20 = sphi 0, %s18
    %s21 = sphi 0, %s19
    %s33 = sphi 0, %s35
    %s36 = sphi 0, %s33
    %s37 = sphi 0, %s36
    %s53 = sphi 0, %s37
    %s57 = sphi 0, %s57
    %s59 = sphi 0, %s57
    %s60 = sphi 0, %s59
    %s74 = sphi 0, %s60
    %s78 = sphi 0, %s78
    %s80 = sphi 0, %s78
    %s81 = sphi 0, %s80
    %s95 = sphi 0, %s81
    %s103 = sphi 0, %s105
    %s106 = sphi 0, %s103
    %s107 = sphi 0, %s106
    %s123 = sphi 0, %s107
  $region4: #{downsample_forward.1} parent=0 // loop_header_branch
    %12 = sbr.rel (%p10) target = $region8
  $region5: #{downsample_forward.1} parent=0 // loop_body
    %s14 = ssub.s32 %s9, 1
    %s15 = ssub.s32 %s9, 2
    %s22 = sadd.s32 1, %s17
    %p23 = scmp.ge.s32.totalorder %s22, 1
    %s24 = scalar_select %p23, 0, %s22
    %s25 = sadd.s32 1, %s16
    %s26 = scalar_select %p23, %s25, %s16
    %p27 = scmp.ge.s32.totalorder %s26, 2
    %s28 = scalar_select %p27, 0, %s26
    %s29 = ssub.s32 %s16, %s28
    %s30 = ssub.s32 %s17, %s24
    %s31 = sor.u32 %s29, %s30
    %p32 = scmp.eq.s32.totalorder %s31, 0
    %s34 = sadd.s32 %s33, 1
    %s35 = scalar_select %p32, %s33, %s34
    %p38 = pneg %p32
    %p39 = scmp.eq.s32.totalorder %s9, 1
    %p40 = por %p38, %p39
    %p41 = scmp.ne.s32.totalorder %s33, %s36
    %p42 = scmp.eq.s32.totalorder %s9, 0
    %p43 = por %p41, %p42
    %p44 = scmp.ne.s32.totalorder %s33, %s36
    %p45 = scmp.eq.s32.totalorder %s14, 1
    %p46 = por %p44, %p45
    %p47 = scmp.ne.s32.totalorder %s36, %s37
    %p48 = scmp.eq.s32.totalorder %s14, 0
    %p49 = por %p47, %p48
    %p50 = scmp.ne.s32.totalorder %s36, %s37
    %p51 = scmp.eq.s32.totalorder %s15, 1
    %p52 = por %p50, %p51
    %p54 = scmp.ne.s32.totalorder %s37, %s53
    %p55 = scmp.eq.s32.totalorder %s15, 0
    %p56 = por %p54, %p55
    %s58 = sadd.s32 %s57, 1
    %p61 = scmp.eq.s32.totalorder %s9, 1
    %p62 = scmp.ne.s32.totalorder %s57, %s59
    %p63 = scmp.eq.s32.totalorder %s9, 0
    %p64 = por %p62, %p63
    %p65 = scmp.ne.s32.totalorder %s57, %s59
    %p66 = scmp.eq.s32.totalorder %s14, 1
    %p67 = por %p65, %p66
    %p68 = scmp.ne.s32.totalorder %s59, %s60
    %p69 = scmp.eq.s32.totalorder %s14, 0
    %p70 = por %p68, %p69
    %p71 = scmp.ne.s32.totalorder %s59, %s60
    %p72 = scmp.eq.s32.totalorder %s15, 1
    %p73 = por %p71, %p72
    %p75 = scmp.ne.s32.totalorder %s60, %s74
    %p76 = scmp.eq.s32.totalorder %s15, 0
    %p77 = por %p75, %p76
    %s79 = sadd.s32 %s78, 1
    %p82 = scmp.eq.s32.totalorder %s9, 1
    %p83 = scmp.ne.s32.totalorder %s78, %s80
    %p84 = scmp.eq.s32.totalorder %s9, 0
    %p85 = por %p83, %p84
    %p86 = scmp.ne.s32.totalorder %s78, %s80
    %p87 = scmp.eq.s32.totalorder %s14, 1
    %p88 = por %p86, %p87
    %p89 = scmp.ne.s32.totalorder %s80, %s81
    %p90 = scmp.eq.s32.totalorder %s14, 0
    %p91 = por %p89, %p90
    %p92 = scmp.ne.s32.totalorder %s80, %s81
    %p93 = scmp.eq.s32.totalorder %s15, 1
    %p94 = por %p92, %p93
    %p96 = scmp.ne.s32.totalorder %s81, %s95
    %p97 = scmp.eq.s32.totalorder %s15, 0
    %p98 = por %p96, %p97
    %s99 = ssub.s32 %s16, %s28
    %s100 = ssub.s32 %s17, %s24
    %s101 = sor.u32 %s99, %s100
    %p102 = scmp.eq.s32.totalorder %s101, 0
    %s104 = sadd.s32 %s103, 1
    %s105 = scalar_select %p102, %s103, %s104
    %p108 = pneg %p102
    %p109 = scmp.eq.s32.totalorder %s9, 1
    %p110 = por %p108, %p109
    %p111 = scmp.ne.s32.totalorder %s103, %s106
    %p112 = scmp.eq.s32.totalorder %s9, 0
    %p113 = por %p111, %p112
    %p114 = scmp.ne.s32.totalorder %s103, %s106
    %p115 = scmp.eq.s32.totalorder %s14, 1
    %p116 = por %p114, %p115
    %p117 = scmp.ne.s32.totalorder %s106, %s107
    %p118 = scmp.eq.s32.totalorder %s14, 0
    %p119 = por %p117, %p118
    %p120 = scmp.ne.s32.totalorder %s106, %s107
    %p121 = scmp.eq.s32.totalorder %s15, 1
    %p122 = por %p120, %p121
    %p124 = scmp.ne.s32.totalorder %s107, %s123
    %p125 = scmp.eq.s32.totalorder %s15, 0
    %p126 = por %p124, %p125
    %p127 = scmp.le.s32.totalorder 1, %s9
    %p128 = scmp.lt.s32.totalorder %s9, 3
    %p129 = pnand %p127, %p128
    %p130 = pneg %p129
    // Predicated region
    $region9: #{downsample_forward.1} parent=5 // pred_check
      _
    $region10: #{downsample_forward.1} parent=5 // pred_check_branch
      %132 = sbr.rel (%p129) target = $region12
    $region11: #{downsample_forward.1} parent=5 // pred_region
      %s133 = ssub.s32 %s9, 1
      // Predicated region
      $region13: #{downsample_forward.1} parent=11 // pred_check
        %p134 = pneg %p70
      $region14: #{downsample_forward.1} parent=11 // pred_check_branch
        %136 = sbr.rel (%p134) target = $region16
      $region15: #{downsample_forward.1} parent=11 // pred_region
        _
      $region16: #{downsample_forward.1} parent=11 // pred_fallthru
        _
      // Predicated region
      $region17: #{downsample_forward.1} parent=11 // pred_check
        %p137 = pneg %p91
      $region18: #{downsample_forward.1} parent=11 // pred_check_branch
        %139 = sbr.rel (%p137) target = $region20
      $region19: #{downsample_forward.1} parent=11 // pred_region
        _
      $region20: #{downsample_forward.1} parent=11 // pred_fallthru
        _
    $region12: #{downsample_forward.1} parent=5 // pred_fallthru
      _
    %p140 = scmp.lt.s32.totalorder %s9, 2
    // Predicated region
    $region21: #{downsample_forward.1} parent=5 // pred_check
      %p141 = pneg %p140
    $region22: #{downsample_forward.1} parent=5 // pred_check_branch
      %143 = sbr.rel (%p141) target = $region24
    $region23: #{downsample_forward.1} parent=5 // pred_region
      // Predicated region
      $region25: #{downsample_forward.1} parent=23 // pred_check
        %p144 = pneg %p43
      $region26: #{downsample_forward.1} parent=23 // pred_check_branch
        %146 = sbr.rel (%p144) target = $region28
      $region27: #{downsample_forward.1} parent=23 // pred_region
        %p147 = scmp.lt.s32.totalorder %s16, 1
        %s148 = scalar_select %p147, %s16, 1
        %p149 = scmp.lt.s32.totalorder %s17, 0
        %s150 = scalar_select %p149, %s17, 0
        %s151 = smul.addr %s148, 2
        %s152 = sadd.s32 %s150, %s151
        %s153 = smul.addr %s152, 8
        %s154 = scalar_lea.vmem %s0, %s153
      $region28: #{downsample_forward.1} parent=23 // pred_fallthru
        _
    $region24: #{downsample_forward.1} parent=5 // pred_fallthru
      _
    %p155 = scmp.le.s32.totalorder 1, %s9
    %p156 = scmp.lt.s32.totalorder %s9, 3
    %p157 = pnand %p155, %p156
    %p158 = pneg %p157
    // Predicated region
    $region29: #{downsample_forward.1} parent=5 // pred_check
      _
    $region30: #{downsample_forward.1} parent=5 // pred_check_branch
      %160 = sbr.rel (%p157) target = $region32
    $region31: #{downsample_forward.1} parent=5 // pred_region
      %s161 = ssub.s32 %s9, 1
      %p162 = scmp.lt.s32.totalorder %s18, 1
      %s163 = scalar_select %p162, %s18, 1
      %p164 = scmp.lt.s32.totalorder %s19, 0
      %s165 = scalar_select %p164, %s19, 0
      %s166 = smul.addr %s163, 2
      %s167 = sadd.s32 %s165, %s166
      %s168 = smul.addr %s167, 8
      %s169 = scalar_lea.vmem %s0, %s168
      %p170 = pneg %p49
      %p171 = pneg %p46
      %p172 = pneg %p70
      %p173 = pneg %p67
      %p174 = pneg %p91
      %p175 = pneg %p88
      %p176 = pneg %p119
      %p177 = pneg %p116
      %p178 = scmp.lt.s32.totalorder %s18, 1
      %s179 = scalar_select %p178, %s18, 1
      %p180 = scmp.lt.s32.totalorder %s19, 0
      %s181 = scalar_select %p180, %s19, 0
      %s182 = sadd.s32 %s181, %s179
      %s183 = smul.addr %s182, 8
      %s184 = scalar_lea.vmem %s3, %s183
      %p185 = scmp.lt.s32.totalorder %s18, 1
      %s186 = scalar_select %p185, %s18, 1
      %p187 = scmp.lt.s32.totalorder %s19, 0
      %s188 = scalar_select %p187, %s19, 0
      %s189 = smul.addr %s186, 2
      %s190 = sadd.s32 %s188, %s189
      %s191 = smul.addr %s190, 8
      %s192 = scalar_lea.vmem %s0, %s191
      %p193 = scmp.lt.s32.totalorder %s18, 1
      %s194 = scalar_select %p193, %s18, 1
      %p195 = scmp.lt.s32.totalorder %s19, 0
      %s196 = scalar_select %p195, %s19, 0
      %s197 = sadd.s32 %s196, %s194
      %s198 = smul.addr %s197, 8
      %s199 = scalar_lea.vmem %s3, %s198
      %v200 = vld [vmem:[%s1] sm:$0xff]
      %v201 = vld [vmem:[%s192] sm:$0xff]
      %v202 = vld [vmem:[%s192 + $0x8] sm:$0xff]
      %v203 = vld [vmem:[%s2] sm:$0xff]
      %205 = vset.pattern.permute.xlu0 0
      %206 = vperm.xlu0 %205, %v203
      %v207 = vpop.permute.xlu0 %206
      %vm209 = vcmask 130048
      %v211 = vsel %vm209, %v200, 0
      %213 = vmatprep.subr.mxu0 0.0
      %214 = vmatpush1.msra.mxu0 %v201
      %215 = vmatprep.subr.mxu0 0.0
      %216 = vmatpush1.msra.mxu0 %v202
      %217 = vmatprep.subr.mxu0 0.0
      %218 = vmatpush1.msra.mxu0 0.0
      %219 = vmatprep.subr.mxu0 0.0
      %220 = vmatpush1.msra.mxu0 0.0
      %221 = vmatprep.subr.mxu0 0.0
      %222 = vmatpush1.msra.mxu0 0.0
      %223 = vmatprep.subr.mxu0 0.0
      %224 = vmatpush1.msra.mxu0 0.0
      %225 = vmatprep.subr.mxu0 0.0
      %226 = vmatpush1.msra.mxu0 0.0
      %227 = vmatprep.subr.mxu0 0.0
      %228 = vmatpush1.msra.mxu0 0.0
      %229 = vmatprep.subr.mxu0 0.0
      %230 = vmatpush1.msra.mxu0 0.0
      %231 = vmatprep.subr.mxu0 0.0
      %232 = vmatpush1.msra.mxu0 0.0
      %233 = vmatprep.subr.mxu0 0.0
      %234 = vmatpush1.msra.mxu0 0.0
      %235 = vmatprep.subr.mxu0 0.0
      %236 = vmatpush1.msra.mxu0 0.0
      %237 = vmatprep.subr.mxu0 0.0
      %238 = vmatpush1.msra.mxu0 0.0
      %239 = vmatprep.subr.mxu0 0.0
      %240 = vmatpush1.msra.mxu0 0.0
      %241 = vmatprep.subr.mxu0 0.0
      %242 = vmatpush1.msra.mxu0 0.0
      %243 = vmatprep.subr.mxu0 0.0
      %244 = vmatpush1.msra.mxu0 0.0
      %245 = vmatprep.subr.mxu0 0.0
      %246 = vmatpush1.msra.mxu0 0.0
      %247 = vmatprep.subr.mxu0 0.0
      %248 = vmatpush1.msra.mxu0 0.0
      %249 = vmatprep.subr.mxu0 0.0
      %250 = vmatpush1.msra.mxu0 0.0
      %251 = vmatprep.subr.mxu0 0.0
      %252 = vmatpush1.msra.mxu0 0.0
      %253 = vmatprep.subr.mxu0 0.0
      %254 = vmatpush1.msra.mxu0 0.0
      %255 = vmatprep.subr.mxu0 0.0
      %256 = vmatpush1.msra.mxu0 0.0
      %257 = vmatprep.subr.mxu0 0.0
      %258 = vmatpush1.msra.mxu0 0.0
      %259 = vmatprep.subr.mxu0 0.0
      %260 = vmatpush1.msra.mxu0 0.0
      %261 = vmatprep.subr.mxu0 0.0
      %262 = vmatpush1.msra.mxu0 0.0
      %263 = vmatprep.subr.mxu0 0.0
      %264 = vmatpush1.msra.mxu0 0.0
      %265 = vmatprep.subr.mxu0 0.0
      %266 = vmatpush1.msra.mxu0 0.0
      %267 = vmatprep.subr.mxu0 0.0
      %268 = vmatpush1.msra.mxu0 0.0
      %269 = vmatprep.subr.mxu0 0.0
      %270 = vmatpush1.msra.mxu0 0.0
      %271 = vmatprep.subr.mxu0 0.0
      %272 = vmatpush1.msra.mxu0 0.0
      %273 = vmatprep.subr.mxu0 0.0
      %274 = vmatpush1.msra.mxu0 0.0
      %275 = vmatprep.subr.mxu0 0.0
      %276 = vmatpush1.msra.mxu0 0.0
      %277 = vmatprep.mubr.f32.mxu0 0.0
      %278 = vmatmul.mubr.f32.gmra.mrb[0].mxu0 %v211
      %v279 = vpop.f32.mrb[0].mxu0
      %v280 = vadd.f32 %v207, %v279
      %v281 = vpop.f32.mrb[0].mxu0
      %282 = vdwg.mxu0
      %vm283 = vcmask 523264
      %284 = vst.msk [vmem:[%s199] sm:$0xff] %vm283, %v280
      %p285 = scmp.lt.s32.totalorder %s18, 1
      %s286 = scalar_select %p285, %s18, 1
      %p287 = scmp.lt.s32.totalorder %s19, 0
      %s288 = scalar_select %p287, %s19, 0
      %s289 = sadd.s32 %s288, %s286
      %s290 = smul.addr %s289, 8
      %s291 = scalar_lea.vmem %s3, %s290
      // Predicated region
      $region33: #{downsample_forward.1} parent=31 // pred_check
        %p292 = pneg %p116
      $region34: #{downsample_forward.1} parent=31 // pred_check_branch
        %294 = sbr.rel (%p292) target = $region36
      $region35: #{downsample_forward.1} parent=31 // pred_region
        _
      $region36: #{downsample_forward.1} parent=31 // pred_fallthru
        _
    $region32: #{downsample_forward.1} parent=5 // pred_fallthru
      _
    %p295 = scmp.le.s32.totalorder 2, %s9
    // Predicated region
    $region37: #{downsample_forward.1} parent=5 // pred_check
      %p296 = pneg %p295
    $region38: #{downsample_forward.1} parent=5 // pred_check_branch
      %298 = sbr.rel (%p296) target = $region40
    $region39: #{downsample_forward.1} parent=5 // pred_region
      %s299 = ssub.s32 %s9, 2
      // Predicated region
      $region41: #{downsample_forward.1} parent=39 // pred_check
        %p300 = pneg %p122
      $region42: #{downsample_forward.1} parent=39 // pred_check_branch
        %302 = sbr.rel (%p300) target = $region44
      $region43: #{downsample_forward.1} parent=39 // pred_region
        %p303 = scmp.lt.s32.totalorder %s20, 1
        %s304 = scalar_select %p303, %s20, 1
        %p305 = scmp.lt.s32.totalorder %s21, 0
        %s306 = scalar_select %p305, %s21, 0
        %s307 = sadd.s32 %s306, %s304
        %s308 = smul.addr %s307, 8
        %s309 = scalar_lea.vmem %s3, %s308
      $region44: #{downsample_forward.1} parent=39 // pred_fallthru
        _
    $region40: #{downsample_forward.1} parent=5 // pred_fallthru
      _
  $region6: #{downsample_forward.1} parent=0 // loop_footer
    %s13 = sadd.s32 1, %s9
  $region7: #{downsample_forward.1} parent=0 // loop_footer_branch
    %8 = sbr.rel target = $region3
  $region8: #{downsample_forward.1} parent=0 // loop_exit
    _

</llo_original>
